<compile_context>
chip_gen: v7x
topology: tpu7x:2x2x1
jax: 0.10.0
libtpu: 0.0.40
codegen_flags: <defaults>
</compile_context>

<pallas_src>
import jax
import jax.numpy as jnp
from jax.experimental import pallas as pl
from jax.experimental.pallas import tpu as pltpu


BIT = 8
THD_NEG = float(-(2 ** (BIT - 1)))          # -128 for bit=8 (asymmetric, not all_positive)
THD_POS = float(2 ** (BIT - 1) - 1)         # 127
MIN_S = 1e-7

_TARGET_TILE_BYTES = 2 << 20                # ~2 MiB input tile: >= HBM-roofline tile size,
                                            # 4x double-buffered working set ~8 MiB (v7x safe)
_SUBLANE_MULT = 32                          # row-tile multiple safe for f32/bf16/int8 packing


def _lsq_act_kernel(s_ref, x_ref, o_ref):
    """Elementwise LSQ activation fake-quant on one (row_tile, lane) tile."""
    s = jnp.maximum(s_ref[0].astype(jnp.float32), MIN_S)   # scalar step size from SMEM
    x = x_ref[...].astype(jnp.float32)
    # True division (bit-parity with torch x / s), clamp, round half-to-even.
    xq = jnp.round(jnp.clip(x / s, THD_NEG, THD_POS))
    # noise_scale == 0 -> add_noise is identity; int_flag == False -> dequantize.
    # TODO(synk): noise injection path (noise_scale != 0 uses torch.randn_like) not implemented.
    o_ref[...] = (xq * s).astype(o_ref.dtype)


def _choose_layout(n):
    """Pick the widest lane width that divides n so no padding is required."""
    for lane in (4096, 2048, 1024, 512, 256, 128):
        if n % lane == 0:
            return lane, n // lane, 0
    # Fallback (rare): pad flat length up to a multiple of (8, 128).
    lane = 128
    chunk = 8 * lane
    padded = pl.cdiv(n, chunk) * chunk
    return lane, padded // lane, padded - n


def lsq_act_quantize(x, s):
    """x: any-shape float array (e.g. NCHW activations). s: scalar LSQ step size."""
    orig_shape = x.shape
    dtype = x.dtype
    n = x.size
    itemsize = jnp.dtype(dtype).itemsize

    lane, rows, pad = _choose_layout(n)
    flat = x.reshape(-1)
    if pad:
        flat = jnp.pad(flat, (0, pad))
    slab = flat.reshape(rows, lane)            # lane-dense 2D view, HBM dtype unchanged

    # Row-tile sizing: ~2 MiB input tile, rounded to a sublane-safe multiple.
    row_tile = max(1, _TARGET_TILE_BYTES // (lane * itemsize))
    if row_tile >= rows:
        row_tile = rows                        # whole slab in one block -> grid=(1,)
    else:
        row_tile = max(_SUBLANE_MULT, (row_tile // _SUBLANE_MULT) * _SUBLANE_MULT)
    grid_rows = pl.cdiv(rows, row_tile)

    s_arr = jnp.asarray(s, dtype=jnp.float32).reshape((1,))

    out = pl.pallas_call(
        _lsq_act_kernel,
        out_shape=jax.ShapeDtypeStruct((rows, lane), dtype),
        grid_spec=pltpu.PrefetchScalarGridSpec(
            num_scalar_prefetch=1,
            grid=(grid_rows,),
            in_specs=[pl.BlockSpec((row_tile, lane), lambda i, s_ref: (i, 0))],
            out_specs=pl.BlockSpec((row_tile, lane), lambda i, s_ref: (i, 0)),
        ),
        compiler_params=pltpu.CompilerParams(
            dimension_semantics=("parallel",),      # shard row loop across TCs on v7x
            vmem_limit_bytes=32 * 1024 * 1024,      # <= physical on all gens, raises v5e default
        ),
    )(s_arr, slab)

    out = out.reshape(-1)
    if pad:
        out = out[:n]
    return out.reshape(orig_shape)


def lsq_act_quantize_ref(x, s):
    """Pure-JAX reference matching the PyTorch forward."""
    s = jnp.maximum(jnp.asarray(s, jnp.float32), MIN_S)
    xq = jnp.round(jnp.clip(x.astype(jnp.float32) / s, THD_NEG, THD_POS))
    return (xq * s).astype(x.dtype)


if __name__ == "__main__":
    key = jax.random.PRNGKey(0)
    # NCHW activations, small shape consistent with the module's conv-activation use.
    x = jax.random.normal(key, (2, 4, 16, 16), dtype=jnp.float32) * 3.0

    # Module __init__ sets s = 1.0; use a small deterministic value so the
    # quantization is non-trivial.
    s_param = jnp.float32(0.05)

    out = lsq_act_quantize(x, s_param)
    out = jax.block_until_ready(out)

    ref = lsq_act_quantize_ref(x, s_param)
    assert out.shape == x.shape and out.dtype == x.dtype
    assert jnp.allclose(out, ref, atol=1e-5, rtol=1e-5), "mismatch vs reference"

    print("KERNEL_OK")
</pallas_src>

<mosaic_0001>
module attributes {stable_mosaic.version = 11 : i64} {
  func.func @_lsq_act_kernel(%arg0: i32, %arg1: memref<1xf32, #tpu.memory_space<smem>>, %arg2: memref<1x2048xf32, #tpu.memory_space<vmem>>, %arg3: memref<1x2048xf32, #tpu.memory_space<vmem>>) attributes {dimension_semantics = [#tpu.dimension_semantics<parallel>], iteration_bounds = array<i64: 1>, scalar_prefetch = 1 : i64, scratch_operands = 0 : i64, tpu.core_type = #tpu.core_type<tc>, window_params = [{transform_indices = @transform_0, window_bounds = array<i64: 1, 2048>}, {transform_indices = @transform_1, window_bounds = array<i64: 1, 2048>}]} {
    %c0 = arith.constant 0 : index
    %0 = memref.load %arg1[%c0] : memref<1xf32, #tpu.memory_space<smem>>
    %cst = arith.constant 1.000000e-07 : f32
    %1 = arith.maximumf %0, %cst : f32
    %c0_0 = arith.constant 0 : index
    %c0_1 = arith.constant 0 : index
    %2 = vector.load %arg2[%c0_0, %c0_1] : memref<1x2048xf32, #tpu.memory_space<vmem>>, vector<1x2048xf32>
    %3 = vector.broadcast %1 : f32 to vector<1x2048xf32>
    %4 = arith.divf %2, %3 : vector<1x2048xf32>
    %cst_2 = arith.constant -1.280000e+02 : f32
    %cst_3 = arith.constant 1.270000e+02 : f32
    %5 = vector.broadcast %cst_2 : f32 to vector<1x2048xf32>
    %6 = arith.maximumf %5, %4 : vector<1x2048xf32>
    %7 = vector.broadcast %cst_3 : f32 to vector<1x2048xf32>
    %8 = arith.minimumf %7, %6 : vector<1x2048xf32>
    %9 = math.roundeven %8 : vector<1x2048xf32>
    %10 = vector.broadcast %1 : f32 to vector<1x2048xf32>
    %11 = arith.mulf %9, %10 : vector<1x2048xf32>
    %c0_4 = arith.constant 0 : index
    %c0_5 = arith.constant 0 : index
    %12 = vector.load %arg3[%c0_4, %c0_5] : memref<1x2048xf32, #tpu.memory_space<vmem>>, vector<1x2048xf32>
    tpu.vector_store %arg3[%c0_4, %c0_5], %11 {strides = array<i32>} : memref<1x2048xf32, #tpu.memory_space<vmem>>, vector<1x2048xf32>,
    return
  }
  func.func @transform_0(%arg0: i32, %arg1: memref<1xf32, #tpu.memory_space<smem>>) -> (i32, i32) {
    %c0_i32 = arith.constant 0 : i32
    %c0_i32_0 = arith.constant 0 : i32
    return %arg0, %c0_i32 : i32, i32
  }
  func.func @transform_1(%arg0: i32, %arg1: memref<1xf32, #tpu.memory_space<smem>>) -> (i32, i32) {
    %c0_i32 = arith.constant 0 : i32
    %c0_i32_0 = arith.constant 0 : i32
    return %arg0, %c0_i32 : i32, i32
  }
}

</mosaic_0001>

<llo_original>
// kernel: tpu_custom_call.1
$region0: #{tpu_custom_call.1}
  #allocation0 [shape = 'u32[]', space=smem, size = 0x4, offset = 0x4, fixed_abs, tag = 'smem constant byte address 0x4 - core index']
  #allocation1 [shape = 'u32[144,128]{1,0:T(1,128)}', space=vmem, size = 0x12000, scoped, tag = 'internal scratch']
  #allocation2 [shape = 's32[1]{0}', space=sflag, size = 0x4, scoped, tag = 'scoped memory for tpu_custom_call.1']
  #allocation3 [shape = 'f32[1]{0:T(128)S(6)}', space=smem, size = 0x200, scoped, tag = 'prefetched SMEM operand 0']
  %s0 = inlined_call_operand.<no memory space> [shape: f32[1], index: 0, kind: input, shape index: {}]
  %s1 = inlined_call_operand.hbm [shape: f32[1,2048], index: 1, kind: input, shape index: {}]
  %s2 = inlined_call_operand.hbm [shape: f32[1,2048], index: 2, kind: output, shape index: {}]
  %s3 = sld [smem:[#allocation0]]
  $region18: #{tpu_custom_call.1} parent=0
    _
  %s5 = ssub.s32 1, %s3
  %s6 = scalar_select 0, %s5, %s3
  %7 = sst [smem:[#allocation3]] %s0
  $region1: #{tpu_custom_call.1} parent=0
    #allocation4 [shape = 'u8[8192]{0}', space=vmem, size = 0x2000, scoped, tag = 'input window, operand 1, single buffered']
    #allocation5 [shape = 's32[1]{0}', space=sflag, size = 0x4, scoped, tag = 'scoped memory for tpu_custom_call.1']
    #allocation6 [shape = 's32[1]{0}', space=sflag, size = 0x4, scoped, tag = 'scoped memory for tpu_custom_call.1']
    #allocation7 [shape = 'u8[8192]{0}', space=vmem, size = 0x2000, scoped, tag = 'output window, operand 0, single buffered']
    %8 = vsyncpa [#allocation5], 0
    %9 = vsyncpa [#allocation6], 0
    // Predicated region
    $region2: #{tpu_custom_call.1} parent=1 // pred_check
      _
    $region3: #{tpu_custom_call.1} parent=1 // pred_check_branch
      %11 = sbr.rel (0) target = $region5
    $region4: #{tpu_custom_call.1} parent=1 // pred_region
      %s13 = ssub.s32 256, 256
      %14 = vsyncadd [#allocation5], %s13
      %s16 = sshll.u32 [#allocation4], 4
      %s17 = int_to_ptr.vmem [resolvable:$true] %s16
      %19 = dma.hbm_to_vmem [thread:$0]  %s1, 256, %s17, [#allocation5]
    $region5: #{tpu_custom_call.1} parent=1 // pred_fallthru
      _
    // Predicated region
    $region6: #{tpu_custom_call.1} parent=1 // pred_check
      _
    $region7: #{tpu_custom_call.1} parent=1 // pred_check_branch
      %21 = sbr.rel (0) target = $region9
    $region8: #{tpu_custom_call.1} parent=1 // pred_region
      %22 = dma.done [#allocation5], 256
    $region9: #{tpu_custom_call.1} parent=1 // pred_fallthru
      _
    %s23 = sld [smem:[#allocation3]]
    %s24 = smax.f32 %s23, 1e-07
    %v25 = vld [vmem:[#allocation4] sm:$0xff]
    %v26 = vld [vmem:[#allocation4 + $0x8] sm:$0xff]
    %v27 = vstv %s24
    %v28 = vrcp.pop %v27
    %v29 = vmul.f32 %v25, %v28
    %v30 = vmul.f32 %v26, %v28
    %v31 = vmax.f32 %v29, -128.0
    %v32 = vmax.f32 %v30, -128.0
    %v33 = vmin.f32 %v31, 127.0
    %v34 = vmin.f32 %v32, 127.0
    %v35 = vround.ne.pseudo %v33
    %v36 = vround.ne.pseudo %v34
    %v37 = vmul.f32 %v35, %v27
    %v38 = vmul.f32 %v36, %v27
    %39 = vst [vmem:[#allocation7] sm:$0xff] %v37
    %40 = vst [vmem:[#allocation7 + $0x8] sm:$0xff] %v38
    // Predicated region
    $region10: #{tpu_custom_call.1} parent=1 // pred_check
      _
    $region11: #{tpu_custom_call.1} parent=1 // pred_check_branch
      %42 = sbr.rel (0) target = $region13
    $region12: #{tpu_custom_call.1} parent=1 // pred_region
      %s44 = ssub.s32 256, 256
      %45 = vsyncadd [#allocation6], %s44
      %s47 = sshll.u32 [#allocation7], 4
      %s48 = int_to_ptr.vmem [resolvable:$true] %s47
      %50 = dma.vmem_to_hbm [thread:$0]  %s48, 256, %s2, [#allocation6]
    $region13: #{tpu_custom_call.1} parent=1 // pred_fallthru
      _
    // Predicated region
    $region14: #{tpu_custom_call.1} parent=1 // pred_check
      _
    $region15: #{tpu_custom_call.1} parent=1 // pred_check_branch
      %52 = sbr.rel (0) target = $region17
    $region16: #{tpu_custom_call.1} parent=1 // pred_region
      %53 = dma.done [#allocation6], 256
    $region17: #{tpu_custom_call.1} parent=1 // pred_fallthru
      _
    %54 = vsyncpa [#allocation5], 1
    %55 = vsyncpa [#allocation6], 1

</llo_original>
